<compile_context>
chip_gen: v7x
topology: tpu7x:2x2x1
jax: 0.10.0
libtpu: 0.0.40
codegen_flags: <defaults>
</compile_context>

<pallas_src>
import functools

import jax
import jax.numpy as jnp
from jax import lax
from jax.experimental import pallas as pl
from jax.experimental.pallas import tpu as pltpu


def _round_up(x, m):
    return ((x + m - 1) // m) * m


def _pick_batch_tiling(batch, tile_batch):
    """Pick (tile rows, num tiles).

    Tiles are multiples of 128 rows (lane-dense output rows); the tile count is even when
    the batch spans more than one tile so the "parallel" grid axis splits evenly across
    v7x's two TensorCores, while keeping tail padding small.
    """
    cap = max(128, _round_up(tile_batch, 128))
    if batch <= 128:
        return 128, 1
    if batch <= cap:
        num_tiles = 2
    else:
        num_tiles = pl.cdiv(batch, cap)
        if num_tiles % 2:
            num_tiles += 1
    tb = _round_up(pl.cdiv(batch, num_tiles), 128)
    return tb, num_tiles


def _mlp_kernel(x_ref, w1_ref, b1_ref, w2_ref, b2_ref, w3t_ref, b3_ref, o_ref):
    """One batch tile: Linear+ReLU, Linear+ReLU, Linear(->1) emitted as a lane-dense row."""
    # Layer 1: bf16 MXU matmul, f32 accumulation; bias + ReLU in f32 on the VPU.
    # TODO(synk): with obs_dim=16 this K=16 matmul could be 16 VPU rank-1 FMAs if a bundle
    # dump shows the MXU push/pop cadence is the binding slot (profile-then-apply).
    h = jnp.dot(x_ref[...], w1_ref[...], preferred_element_type=jnp.float32)
    h = jnp.maximum(h + b1_ref[...], 0.0)
    # Layer 2.
    h = jnp.dot(h.astype(jnp.bfloat16), w2_ref[...], preferred_element_type=jnp.float32)
    h = jnp.maximum(h + b2_ref[...], 0.0)
    # Output layer (N = 1): contract the hidden dim of h against the w3 row so the batch
    # lands on lanes -> a single lane-dense (1, tb) result row (unmasked vst on writeback).
    y = lax.dot_general(
        w3t_ref[...], h.astype(jnp.bfloat16),
        dimension_numbers=(((1,), (1,)), ((), ())),
        preferred_element_type=jnp.float32,
    )
    o_ref[0] = (y + b3_ref[...]).astype(o_ref.dtype)


@functools.partial(jax.jit, static_argnames=("tile_batch",))
def baseline_forward(observations, w1, b1, w2, b2, w3, b3, *, tile_batch=2048):
    """Pallas implementation of BaselineNetwork.forward.

    Args:
        observations: [batch, obs_dim] float32
        w1,b1,w2,b2,w3,b3: MLP parameters (x @ W + b convention), biases shaped [1, out].
    Returns:
        [batch] float32 (squeezed baseline values)
    """
    batch, obs_dim = observations.shape
    layer = w1.shape[1]

    # Lane-dense hidden width: zero-pad to a multiple of 128 lanes.
    # TODO(synk): for production layer_size >= 128 on v6e/v7x, align lp to 256 to fill the
    # 256-wide MXU (128 is only a perfect fit for v5e's 128x128 MXU).
    lp = _round_up(layer, 128)
    if lp != layer:
        w1 = jnp.pad(w1, ((0, 0), (0, lp - layer)))
        b1 = jnp.pad(b1, ((0, 0), (0, lp - layer)))
        w2 = jnp.pad(w2, ((0, lp - layer), (0, lp - layer)))
        b2 = jnp.pad(b2, ((0, 0), (0, lp - layer)))
        w3 = jnp.pad(w3, ((0, lp - layer), (0, 0)))
    # MXU operands in bf16; biases stay f32 so the VPU epilogue is f32 on all generations.
    w1 = w1.astype(jnp.bfloat16)
    w2 = w2.astype(jnp.bfloat16)
    w3t = w3.reshape(1, lp).astype(jnp.bfloat16)   # final weight as a row vector

    # Batch tiling (even tile count for v7x megacore balance, 128-row multiples).
    tb, num_tiles = _pick_batch_tiling(batch, tile_batch)
    padded_batch = tb * num_tiles
    x = observations.astype(jnp.bfloat16)          # halves the HBM input stream vs f32
    if padded_batch != batch:
        x = jnp.pad(x, ((0, padded_batch - batch), (0, 0)))

    cost = pl.CostEstimate(
        flops=2 * padded_batch * (obs_dim * lp + lp * lp + lp),
        transcendentals=0,
        bytes_accessed=(2 * (padded_batch * obs_dim + obs_dim * lp + lp * lp + lp)
                        + 4 * (2 * lp + 1 + padded_batch)),
    )

    out = pl.pallas_call(
        _mlp_kernel,
        # Lane-dense output: one (1, tb) row per grid step; flattened/sliced below.
        out_shape=jax.ShapeDtypeStruct((num_tiles, 1, tb), jnp.float32),
        grid=(num_tiles,),
        in_specs=[
            # Observations stream HBM->VMEM one batch tile per grid step (double-buffered).
            pl.BlockSpec((tb, obs_dim), lambda i: (i, 0)),
            # Weights / biases: constant index_map -> VMEM-resident across all tiles.
            pl.BlockSpec((obs_dim, lp), lambda i: (0, 0)),
            pl.BlockSpec((1, lp), lambda i: (0, 0)),
            pl.BlockSpec((lp, lp), lambda i: (0, 0)),
            pl.BlockSpec((1, lp), lambda i: (0, 0)),
            pl.BlockSpec((1, lp), lambda i: (0, 0)),
            pl.BlockSpec((1, 1), lambda i: (0, 0)),
        ],
        out_specs=pl.BlockSpec((1, 1, tb), lambda i: (i, 0, 0)),
        compiler_params=pltpu.CompilerParams(
            # Independent batch tiles -> megacore-shardable on v7x.
            dimension_semantics=("parallel",),
            # VMEM footprint is a few MiB at these sizes (bf16 x tile lane-padded to 128
            # lanes, double-buffered, + constant weight buffers); set vmem_limit_bytes
            # explicitly if tb/layer_size is scaled up on v7x (64 MiB physical).
        ),
        cost_estimate=cost,
    )(x, w1, b1, w2, b2, w3t, b3)

    # torch.squeeze -> [batch]; drop tile/batch padding.
    return out.reshape(padded_batch)[:batch]


def init_params(key, obs_dim, layer_size):
    """Deterministic synthetic parameters (n_layers=2 hidden layers)."""
    k1, k2, k3, k4, k5, k6 = jax.random.split(key, 6)
    scale = 0.1
    w1 = scale * jax.random.normal(k1, (obs_dim, layer_size), jnp.float32)
    b1 = scale * jax.random.normal(k2, (1, layer_size), jnp.float32)
    w2 = scale * jax.random.normal(k3, (layer_size, layer_size), jnp.float32)
    b2 = scale * jax.random.normal(k4, (1, layer_size), jnp.float32)
    w3 = scale * jax.random.normal(k5, (layer_size, 1), jnp.float32)
    b3 = scale * jax.random.normal(k6, (1, 1), jnp.float32)
    return w1, b1, w2, b2, w3, b3


def _reference(observations, w1, b1, w2, b2, w3, b3):
    h = jnp.maximum(observations @ w1 + b1, 0.0)
    h = jnp.maximum(h @ w2 + b2, 0.0)
    return jnp.squeeze(h @ w3 + b3, axis=-1)


if __name__ == "__main__":
    obs_dim, layer_size = 16, 32
    key = jax.random.PRNGKey(0)
    k_obs, k_obs2, k_params = jax.random.split(key, 3)
    params = init_params(k_params, obs_dim, layer_size)

    # Small ragged batch: exercises batch/tile padding + hidden-width padding.
    batch = 10
    observations = jax.random.normal(k_obs, (batch, obs_dim), jnp.float32)
    out = jax.block_until_ready(baseline_forward(observations, *params))
    ref = _reference(observations, *params)
    assert out.shape == (batch,)
    assert out.ndim == 1
    # bf16 MXU operands -> looser tolerance than the f32 reference.
    assert jnp.allclose(out, ref, atol=3e-2, rtol=3e-2)

    # Multi-tile batch: exercises the even-tile parallel grid / pipelined observation stream.
    batch2 = 1040
    observations2 = jax.random.normal(k_obs2, (batch2, obs_dim), jnp.float32)
    out2 = jax.block_until_ready(baseline_forward(observations2, *params))
    ref2 = _reference(observations2, *params)
    assert out2.shape == (batch2,)
    assert jnp.allclose(out2, ref2, atol=3e-2, rtol=3e-2)

    print("KERNEL_OK")
</pallas_src>

<mosaic_0001>
module attributes {stable_mosaic.version = 11 : i64} {
  func.func @_mlp_kernel(%arg0: i32, %arg1: memref<128x16xbf16, #tpu.memory_space<vmem>>, %arg2: memref<16x128xbf16, #tpu.memory_space<vmem>>, %arg3: memref<1x128xf32, #tpu.memory_space<vmem>>, %arg4: memref<128x128xbf16, #tpu.memory_space<vmem>>, %arg5: memref<1x128xf32, #tpu.memory_space<vmem>>, %arg6: memref<1x128xbf16, #tpu.memory_space<vmem>>, %arg7: memref<1x1xf32, #tpu.memory_space<vmem>>, %arg8: memref<1x1x128xf32, #tpu.memory_space<vmem>>) attributes {dimension_semantics = [#tpu.dimension_semantics<parallel>], iteration_bounds = array<i64: 1>, scalar_prefetch = 0 : i64, scratch_operands = 0 : i64, tpu.core_type = #tpu.core_type<tc>, window_params = [{transform_indices = @transform_0, window_bounds = array<i64: 128, 16>}, {pipeline_mode = #tpu.pipeline_mode<synchronous>, transform_indices = @transform_1, window_bounds = array<i64: 16, 128>}, {pipeline_mode = #tpu.pipeline_mode<synchronous>, transform_indices = @transform_2, window_bounds = array<i64: 1, 128>}, {pipeline_mode = #tpu.pipeline_mode<synchronous>, transform_indices = @transform_3, window_bounds = array<i64: 128, 128>}, {pipeline_mode = #tpu.pipeline_mode<synchronous>, transform_indices = @transform_4, window_bounds = array<i64: 1, 128>}, {pipeline_mode = #tpu.pipeline_mode<synchronous>, transform_indices = @transform_5, window_bounds = array<i64: 1, 128>}, {pipeline_mode = #tpu.pipeline_mode<synchronous>, transform_indices = @transform_6, window_bounds = array<i64: 1, 1>}, {transform_indices = @transform_7, window_bounds = array<i64: 1, 1, 128>}]} {
    %c0 = arith.constant 0 : index
    %c0_0 = arith.constant 0 : index
    %0 = vector.load %arg1[%c0, %c0_0] : memref<128x16xbf16, #tpu.memory_space<vmem>>, vector<128x16xbf16>
    %c0_1 = arith.constant 0 : index
    %c0_2 = arith.constant 0 : index
    %1 = vector.load %arg2[%c0_1, %c0_2] : memref<16x128xbf16, #tpu.memory_space<vmem>>, vector<16x128xbf16>
    %cst = arith.constant dense<0.000000e+00> : vector<128x128xf32>
    %2 = tpu.matmul %0, %1, %cst {dimension_numbers = #tpu.dot_dimension_numbers<[1], [0], [0], [1], [0, 0, 1, 1], [], []>} : vector<128x16xbf16>, vector<16x128xbf16>, vector<128x128xf32> -> vector<128x128xf32>
    %c0_3 = arith.constant 0 : index
    %c0_4 = arith.constant 0 : index
    %3 = vector.load %arg3[%c0_3, %c0_4] : memref<1x128xf32, #tpu.memory_space<vmem>>, vector<1x128xf32>
    %4 = vector.broadcast %3 : vector<1x128xf32> to vector<128x128xf32>
    %5 = arith.addf %2, %4 : vector<128x128xf32>
    %cst_5 = arith.constant 0.000000e+00 : f32
    %6 = vector.broadcast %cst_5 : f32 to vector<128x128xf32>
    %7 = arith.maximumf %5, %6 : vector<128x128xf32>
    %8 = arith.truncf %7 : vector<128x128xf32> to vector<128x128xbf16>
    %c0_6 = arith.constant 0 : index
    %c0_7 = arith.constant 0 : index
    %9 = vector.load %arg4[%c0_6, %c0_7] : memref<128x128xbf16, #tpu.memory_space<vmem>>, vector<128x128xbf16>
    %cst_8 = arith.constant dense<0.000000e+00> : vector<128x128xf32>
    %10 = tpu.matmul %8, %9, %cst_8 {dimension_numbers = #tpu.dot_dimension_numbers<[1], [0], [0], [1], [0, 0, 1, 1], [], []>} : vector<128x128xbf16>, vector<128x128xbf16>, vector<128x128xf32> -> vector<128x128xf32>
    %c0_9 = arith.constant 0 : index
    %c0_10 = arith.constant 0 : index
    %11 = vector.load %arg5[%c0_9, %c0_10] : memref<1x128xf32, #tpu.memory_space<vmem>>, vector<1x128xf32>
    %12 = vector.broadcast %11 : vector<1x128xf32> to vector<128x128xf32>
    %13 = arith.addf %10, %12 : vector<128x128xf32>
    %cst_11 = arith.constant 0.000000e+00 : f32
    %14 = vector.broadcast %cst_11 : f32 to vector<128x128xf32>
    %15 = arith.maximumf %13, %14 : vector<128x128xf32>
    %c0_12 = arith.constant 0 : index
    %c0_13 = arith.constant 0 : index
    %16 = vector.load %arg6[%c0_12, %c0_13] : memref<1x128xbf16, #tpu.memory_space<vmem>>, vector<1x128xbf16>
    %17 = arith.truncf %15 : vector<128x128xf32> to vector<128x128xbf16>
    %cst_14 = arith.constant dense<0.000000e+00> : vector<1x128xf32>
    %18 = tpu.matmul %16, %17, %cst_14 {dimension_numbers = #tpu.dot_dimension_numbers<[1], [1], [0], [0], [0, 0, 1, 0], [], []>} : vector<1x128xbf16>, vector<128x128xbf16>, vector<1x128xf32> -> vector<1x128xf32>
    %c0_15 = arith.constant 0 : index
    %c0_16 = arith.constant 0 : index
    %19 = vector.load %arg7[%c0_15, %c0_16] : memref<1x1xf32, #tpu.memory_space<vmem>>, vector<1x1xf32>
    %20 = vector.broadcast %19 : vector<1x1xf32> to vector<1x128xf32>
    %21 = arith.addf %18, %20 : vector<1x128xf32>
    %c0_17 = arith.constant 0 : index
    %c0_18 = arith.constant 0 : index
    %c0_19 = arith.constant 0 : index
    %22 = vector.load %arg8[%c0_17, %c0_18, %c0_19] : memref<1x1x128xf32, #tpu.memory_space<vmem>>, vector<1x1x128xf32>
    %23 = vector.shape_cast %22 : vector<1x1x128xf32> to vector<1x128xf32>
    %24 = vector.shape_cast %21 : vector<1x128xf32> to vector<1x1x128xf32>
    tpu.vector_store %arg8[%c0_17, %c0_18, %c0_19], %24 {strides = array<i32>} : memref<1x1x128xf32, #tpu.memory_space<vmem>>, vector<1x1x128xf32>,
    return
  }
  func.func @transform_0(%arg0: i32) -> (i32, i32) {
    %c0_i32 = arith.constant 0 : i32
    %c0_i32_0 = arith.constant 0 : i32
    return %arg0, %c0_i32 : i32, i32
  }
  func.func @transform_1(%arg0: i32) -> (i32, i32) {
    %c0_i32 = arith.constant 0 : i32
    %c0_i32_0 = arith.constant 0 : i32
    %c0_i32_1 = arith.constant 0 : i32
    return %c0_i32, %c0_i32_0 : i32, i32
  }
  func.func @transform_2(%arg0: i32) -> (i32, i32) {
    %c0_i32 = arith.constant 0 : i32
    %c0_i32_0 = arith.constant 0 : i32
    %c0_i32_1 = arith.constant 0 : i32
    return %c0_i32, %c0_i32_0 : i32, i32
  }
  func.func @transform_3(%arg0: i32) -> (i32, i32) {
    %c0_i32 = arith.constant 0 : i32
    %c0_i32_0 = arith.constant 0 : i32
    %c0_i32_1 = arith.constant 0 : i32
    return %c0_i32, %c0_i32_0 : i32, i32
  }
  func.func @transform_4(%arg0: i32) -> (i32, i32) {
    %c0_i32 = arith.constant 0 : i32
    %c0_i32_0 = arith.constant 0 : i32
    %c0_i32_1 = arith.constant 0 : i32
    return %c0_i32, %c0_i32_0 : i32, i32
  }
  func.func @transform_5(%arg0: i32) -> (i32, i32) {
    %c0_i32 = arith.constant 0 : i32
    %c0_i32_0 = arith.constant 0 : i32
    %c0_i32_1 = arith.constant 0 : i32
    return %c0_i32, %c0_i32_0 : i32, i32
  }
  func.func @transform_6(%arg0: i32) -> (i32, i32) {
    %c0_i32 = arith.constant 0 : i32
    %c0_i32_0 = arith.constant 0 : i32
    %c0_i32_1 = arith.constant 0 : i32
    return %c0_i32, %c0_i32_0 : i32, i32
  }
  func.func @transform_7(%arg0: i32) -> (i32, i32, i32) {
    %c0_i32 = arith.constant 0 : i32
    %c0_i32_0 = arith.constant 0 : i32
    %c0_i32_1 = arith.constant 0 : i32
    return %arg0, %c0_i32, %c0_i32_0 : i32, i32, i32
  }
}

</mosaic_0001>

<llo_original>
// kernel: baseline_forward.1
$region0: #{baseline_forward.1}
  #allocation0 [shape = 'u32[]', space=smem, size = 0x4, offset = 0x4, fixed_abs, tag = 'smem constant byte address 0x4 - core index']
  #allocation1 [shape = 'u32[144,128]{1,0:T(1,128)}', space=vmem, size = 0x12000, scoped, tag = 'internal scratch']
  #allocation2 [shape = 'f32[1,1]{1,0:T(1,128)S(1)}', space=vmem, size = 0x200, scoped, tag = 'scoped memory for baseline_forward.1']
  %s0 = inlined_call_operand.vmem [shape: bf16[128,16], index: 0, kind: input, shape index: {}]
  %s1 = inlined_call_operand.vmem [shape: bf16[16,128], index: 1, kind: input, shape index: {}]
  %s2 = inlined_call_operand.vmem [shape: f32[1,128], index: 2, kind: input, shape index: {}]
  %s3 = inlined_call_operand.vmem [shape: bf16[128,128], index: 3, kind: input, shape index: {}]
  %s4 = inlined_call_operand.vmem [shape: f32[1,128], index: 4, kind: input, shape index: {}]
  %s5 = inlined_call_operand.vmem [shape: bf16[1,128], index: 5, kind: input, shape index: {}]
  %s6 = inlined_call_operand.<no memory space> [shape: f32[1,1], index: 6, kind: input, shape index: {}]
  %s7 = inlined_call_operand.vmem [shape: f32[1,1,128], index: 7, kind: output, shape index: {}]
  %s8 = sld [smem:[#allocation0]]
  $region38: #{baseline_forward.1} parent=0
    _
  %s10 = ssub.s32 1, %s8
  %s11 = scalar_select 0, %s10, %s8
  %v12 = vstv %s6
  %13 = vst [vmem:[#allocation2] sm:$0x1] %v12
  // Predicated region
  $region2: #{baseline_forward.1} parent=0 // pred_check
    _
  $region3: #{baseline_forward.1} parent=0 // pred_check_branch
    %15 = sbr.rel (0) target = $region5
  $region4: #{baseline_forward.1} parent=0 // pred_region
    _
  $region5: #{baseline_forward.1} parent=0 // pred_fallthru
    _
  // Predicated region
  $region6: #{baseline_forward.1} parent=0 // pred_check
    _
  $region7: #{baseline_forward.1} parent=0 // pred_check_branch
    %17 = sbr.rel (0) target = $region9
  $region8: #{baseline_forward.1} parent=0 // pred_region
    _
  $region9: #{baseline_forward.1} parent=0 // pred_fallthru
    _
  // Predicated region
  $region10: #{baseline_forward.1} parent=0 // pred_check
    _
  $region11: #{baseline_forward.1} parent=0 // pred_check_branch
    %19 = sbr.rel (0) target = $region13
  $region12: #{baseline_forward.1} parent=0 // pred_region
    _
  $region13: #{baseline_forward.1} parent=0 // pred_fallthru
    _
  // Predicated region
  $region14: #{baseline_forward.1} parent=0 // pred_check
    _
  $region15: #{baseline_forward.1} parent=0 // pred_check_branch
    %21 = sbr.rel (0) target = $region17
  $region16: #{baseline_forward.1} parent=0 // pred_region
    _
  $region17: #{baseline_forward.1} parent=0 // pred_fallthru
    _
  // Predicated region
  $region18: #{baseline_forward.1} parent=0 // pred_check
    _
  $region19: #{baseline_forward.1} parent=0 // pred_check_branch
    %23 = sbr.rel (0) target = $region21
  $region20: #{baseline_forward.1} parent=0 // pred_region
    _
  $region21: #{baseline_forward.1} parent=0 // pred_fallthru
    _
  // Predicated region
  $region22: #{baseline_forward.1} parent=0 // pred_check
    _
  $region23: #{baseline_forward.1} parent=0 // pred_check_branch
    %25 = sbr.rel (0) target = $region25
  $region24: #{baseline_forward.1} parent=0 // pred_region
    _
  $region25: #{baseline_forward.1} parent=0 // pred_fallthru
    _
  // Predicated region
  $region26: #{baseline_forward.1} parent=0 // pred_check
    _
  $region27: #{baseline_forward.1} parent=0 // pred_check_branch
    %27 = sbr.rel (0) target = $region29
  $region28: #{baseline_forward.1} parent=0 // pred_region
    _
  $region29: #{baseline_forward.1} parent=0 // pred_fallthru
    _
  %v29 = vld [vmem:[%s0] sm:$0xf]
  %v30 = vld [vmem:[%s0 + $0x4] sm:$0xf]
  %v31 = vld [vmem:[%s0 + $0x8] sm:$0xf]
  %v32 = vld [vmem:[%s0 + $0xc] sm:$0xf]
  %v33 = vld [vmem:[%s0 + $0x10] sm:$0xf]
  %v34 = vld [vmem:[%s0 + $0x14] sm:$0xf]
  %v35 = vld [vmem:[%s0 + $0x18] sm:$0xf]
  %v36 = vld [vmem:[%s0 + $0x1c] sm:$0xf]
  %v37 = vld [vmem:[%s0 + $0x20] sm:$0xf]
  %v38 = vld [vmem:[%s0 + $0x24] sm:$0xf]
  %v39 = vld [vmem:[%s0 + $0x28] sm:$0xf]
  %v40 = vld [vmem:[%s0 + $0x2c] sm:$0xf]
  %v41 = vld [vmem:[%s0 + $0x30] sm:$0xf]
  %v42 = vld [vmem:[%s0 + $0x34] sm:$0xf]
  %v43 = vld [vmem:[%s0 + $0x38] sm:$0xf]
  %v44 = vld [vmem:[%s0 + $0x3c] sm:$0xf]
  %v45 = vld [vmem:[%s1] sm:$0xf]
  %v46 = vld [vmem:[%s1 + $0x4] sm:$0xf]
  %v47 = vld [vmem:[%s2] sm:$0x1]
  %v49 = vlaneseq
  %v50 = vshrl.u32 %v49, 7
  %v51 = vsub.s32 0, %v50
  %v52 = vrot.slane %v47, %v51
  %v70 = vunpack.c.l.b16 %v29
  %v71 = vunpack.c.l.b16 %v30
  %v72 = vunpack.c.l.b16 %v31
  %v73 = vunpack.c.l.b16 %v32
  %v74 = vunpack.c.l.b16 %v33
  %v75 = vunpack.c.l.b16 %v34
  %v76 = vunpack.c.l.b16 %v35
  %v77 = vunpack.c.l.b16 %v36
  %v78 = vunpack.c.l.b16 %v37
  %v79 = vunpack.c.l.b16 %v38
  %v80 = vunpack.c.l.b16 %v39
  %v81 = vunpack.c.l.b16 %v40
  %v82 = vunpack.c.l.b16 %v41
  %v83 = vunpack.c.l.b16 %v42
  %v84 = vunpack.c.l.b16 %v43
  %v85 = vunpack.c.l.b16 %v44
  %v86 = vpack.c.b16 %v71, %v70
  %v87 = vpack.c.b16 %v73, %v72
  %v88 = vpack.c.b16 %v75, %v74
  %v89 = vpack.c.b16 %v77, %v76
  %v90 = vpack.c.b16 %v79, %v78
  %v91 = vpack.c.b16 %v81, %v80
  %v92 = vpack.c.b16 %v83, %v82
  %v93 = vpack.c.b16 %v85, %v84
  %v96 = vunpack.c.l.b16 %v45
  %v97 = vunpack.c.l.b16 %v46
  %v98 = vpack.c.b16 %v97, %v96
  %vm100 = vcmask 130048
  %v102 = vsel %vm100, %v86, 0
  %v105 = vsel %vm100, %v87, 0
  %v108 = vsel %vm100, %v88, 0
  %v111 = vsel %vm100, %v89, 0
  %v114 = vsel %vm100, %v90, 0
  %v117 = vsel %vm100, %v91, 0
  %v120 = vsel %vm100, %v92, 0
  %v123 = vsel %vm100, %v93, 0
  %125 = vmatprep.subr.bf16.mxu0 0
  %126 = vmatpush1.bf16.msra.mxu0 %v98
  %127 = vmatprep.subr.bf16.mxu0 0
  %128 = vmatpush1.bf16.msra.mxu0 0
  %129 = vmatprep.subr.bf16.mxu0 0
  %130 = vmatpush1.bf16.msra.mxu0 0
  %131 = vmatprep.subr.bf16.mxu0 0
  %132 = vmatpush1.bf16.msra.mxu0 0
  %133 = vmatprep.subr.bf16.mxu0 0
  %134 = vmatpush1.bf16.msra.mxu0 0
  %135 = vmatprep.subr.bf16.mxu0 0
  %136 = vmatpush1.bf16.msra.mxu0 0
  %137 = vmatprep.subr.bf16.mxu0 0
  %138 = vmatpush1.bf16.msra.mxu0 0
  %139 = vmatprep.subr.bf16.mxu0 0
  %140 = vmatpush1.bf16.msra.mxu0 0
  %141 = vmatprep.subr.bf16.mxu0 0
  %142 = vmatpush1.bf16.msra.mxu0 0
  %143 = vmatprep.subr.bf16.mxu0 0
  %144 = vmatpush1.bf16.msra.mxu0 0
  %145 = vmatprep.subr.bf16.mxu0 0
  %146 = vmatpush1.bf16.msra.mxu0 0
  %147 = vmatprep.subr.bf16.mxu0 0
  %148 = vmatpush1.bf16.msra.mxu0 0
  %149 = vmatprep.subr.bf16.mxu0 0
  %150 = vmatpush1.bf16.msra.mxu0 0
  %151 = vmatprep.subr.bf16.mxu0 0
  %152 = vmatpush1.bf16.msra.mxu0 0
  %153 = vmatprep.subr.bf16.mxu0 0
  %154 = vmatpush1.bf16.msra.mxu0 0
  %155 = vmatprep.subr.bf16.mxu0 0
  %156 = vmatpush1.bf16.msra.mxu0 0
  %157 = vmatprep.mubr.bf16.mxu0 0
  %158 = vmatmul.mubr.bf16.gmra.mrb[0].mxu0 %v102
  %v159 = vpop.f32.mrb[0].mxu0
  %v160 = vadd.f32 %v52, %v159
  %v161 = vpop.f32.mrb[0].mxu0
  %v162 = vpop.f32.mrb[0].mxu0
  %v163 = vadd.f32 %v52, %v162
  %v164 = vpop.f32.mrb[0].mxu0
  %165 = vmatprep.mubr.bf16.mxu0 0
  %166 = vmatmul.mubr.bf16.gmra.mrb[0].mxu0 %v105
  %v167 = vpop.f32.mrb[0].mxu0
  %v168 = vadd.f32 %v52, %v167
  %v169 = vpop.f32.mrb[0].mxu0
  %v170 = vpop.f32.mrb[0].mxu0
  %v171 = vadd.f32 %v52, %v170
  %v172 = vpop.f32.mrb[0].mxu0
  %173 = vmatprep.mubr.bf16.mxu0 0
  %174 = vmatmul.mubr.bf16.gmra.mrb[0].mxu0 %v108
  %v175 = vpop.f32.mrb[0].mxu0
  %v176 = vadd.f32 %v52, %v175
  %v177 = vpop.f32.mrb[0].mxu0
  %v178 = vpop.f32.mrb[0].mxu0
  %v179 = vadd.f32 %v52, %v178
  %v180 = vpop.f32.mrb[0].mxu0
  %181 = vmatprep.mubr.bf16.mxu0 0
  %182 = vmatmul.mubr.bf16.gmra.mrb[0].mxu0 %v111
  %v183 = vpop.f32.mrb[0].mxu0
  %v184 = vadd.f32 %v52, %v183
  %v185 = vpop.f32.mrb[0].mxu0
  %v186 = vpop.f32.mrb[0].mxu0
  %v187 = vadd.f32 %v52, %v186
  %v188 = vpop.f32.mrb[0].mxu0
  %189 = vmatprep.mubr.bf16.mxu0 0
  %190 = vmatmul.mubr.bf16.gmra.mrb[0].mxu0 %v114
  %v191 = vpop.f32.mrb[0].mxu0
  %v192 = vadd.f32 %v52, %v191
  %v193 = vpop.f32.mrb[0].mxu0
  %v194 = vpop.f32.mrb[0].mxu0
  %v195 = vadd.f32 %v52, %v194
  %v196 = vpop.f32.mrb[0].mxu0
  %197 = vmatprep.mubr.bf16.mxu0 0
  %198 = vmatmul.mubr.bf16.gmra.mrb[0].mxu0 %v117
  %v199 = vpop.f32.mrb[0].mxu0
  %v200 = vadd.f32 %v52, %v199
  %v201 = vpop.f32.mrb[0].mxu0
  %v202 = vpop.f32.mrb[0].mxu0
  %v203 = vadd.f32 %v52, %v202
  %v204 = vpop.f32.mrb[0].mxu0
  %205 = vmatprep.mubr.bf16.mxu0 0
  %206 = vmatmul.mubr.bf16.gmra.mrb[0].mxu0 %v120
  %v207 = vpop.f32.mrb[0].mxu0
  %v208 = vadd.f32 %v52, %v207
  %v209 = vpop.f32.mrb[0].mxu0
  %v210 = vpop.f32.mrb[0].mxu0
  %v211 = vadd.f32 %v52, %v210
  %v212 = vpop.f32.mrb[0].mxu0
  %213 = vmatprep.mubr.bf16.mxu0 0
  %214 = vmatmul.mubr.bf16.gmra.mrb[0].mxu0 %v123
  %v215 = vpop.f32.mrb[0].mxu0
  %v216 = vadd.f32 %v52, %v215
  %v217 = vpop.f32.mrb[0].mxu0
  %v218 = vpop.f32.mrb[0].mxu0
  %v219 = vadd.f32 %v52, %v218
  %v220 = vpop.f32.mrb[0].mxu0
  %221 = vdwg.mxu0
  %v222 = vmax.f32 %v160, 0.0
  %v223 = vmax.f32 %v163, 0.0
  %v224 = vmax.f32 %v168, 0.0
  %v225 = vmax.f32 %v171, 0.0
  %v226 = vmax.f32 %v176, 0.0
  %v227 = vmax.f32 %v179, 0.0
  %v228 = vmax.f32 %v184, 0.0
  %v229 = vmax.f32 %v187, 0.0
  %v230 = vmax.f32 %v192, 0.0
  %v231 = vmax.f32 %v195, 0.0
  %v232 = vmax.f32 %v200, 0.0
  %v233 = vmax.f32 %v203, 0.0
  %v234 = vmax.f32 %v208, 0.0
  %v235 = vmax.f32 %v211, 0.0
  %v236 = vmax.f32 %v216, 0.0
  %v237 = vmax.f32 %v219, 0.0
  %v238 = vpack.c.bf16 %v223, %v222
  %v239 = vpack.c.bf16 %v225, %v224
  %v240 = vpack.c.bf16 %v227, %v226
  %v241 = vpack.c.bf16 %v229, %v228
  %v242 = vpack.c.bf16 %v231, %v230
  %v243 = vpack.c.bf16 %v233, %v232
  %v244 = vpack.c.bf16 %v235, %v234
  %v245 = vpack.c.bf16 %v237, %v236
  %v246 = vld [vmem:[%s3] sm:$0xf]
  %v247 = vld [vmem:[%s3 + $0x4] sm:$0xf]
  %v248 = vld [vmem:[%s3 + $0x8] sm:$0xf]
  %v249 = vld [vmem:[%s3 + $0xc] sm:$0xf]
  %v250 = vld [vmem:[%s3 + $0x10] sm:$0xf]
  %v251 = vld [vmem:[%s3 + $0x14] sm:$0xf]
  %v252 = vld [vmem:[%s3 + $0x18] sm:$0xf]
  %v253 = vld [vmem:[%s3 + $0x1c] sm:$0xf]
  %v254 = vld [vmem:[%s3 + $0x20] sm:$0xf]
  %v255 = vld [vmem:[%s3 + $0x24] sm:$0xf]
  %v256 = vld [vmem:[%s3 + $0x28] sm:$0xf]
  %v257 = vld [vmem:[%s3 + $0x2c] sm:$0xf]
  %v258 = vld [vmem:[%s3 + $0x30] sm:$0xf]
  %v259 = vld [vmem:[%s3 + $0x34] sm:$0xf]
  %v260 = vld [vmem:[%s3 + $0x38] sm:$0xf]
  %v261 = vld [vmem:[%s3 + $0x3c] sm:$0xf]
  %v262 = vld [vmem:[%s4] sm:$0x1]
  %v264 = vlaneseq
  %v265 = vshrl.u32 %v264, 7
  %v266 = vsub.s32 0, %v265
  %v267 = vrot.slane %v262, %v266
  %v285 = vunpack.c.l.b16 %v246
  %v286 = vunpack.c.l.b16 %v247
  %v287 = vunpack.c.l.b16 %v248
  %v288 = vunpack.c.l.b16 %v249
  %v289 = vunpack.c.l.b16 %v250
  %v290 = vunpack.c.l.b16 %v251
  %v291 = vunpack.c.l.b16 %v252
  %v292 = vunpack.c.l.b16 %v253
  %v293 = vunpack.c.l.b16 %v254
  %v294 = vunpack.c.l.b16 %v255
  %v295 = vunpack.c.l.b16 %v256
  %v296 = vunpack.c.l.b16 %v257
  %v297 = vunpack.c.l.b16 %v258
  %v298 = vunpack.c.l.b16 %v259
  %v299 = vunpack.c.l.b16 %v260
  %v300 = vunpack.c.l.b16 %v261
  %v301 = vpack.c.b16 %v286, %v285
  %v302 = vpack.c.b16 %v288, %v287
  %v303 = vpack.c.b16 %v290, %v289
  %v304 = vpack.c.b16 %v292, %v291
  %v305 = vpack.c.b16 %v294, %v293
  %v306 = vpack.c.b16 %v296, %v295
  %v307 = vpack.c.b16 %v298, %v297
  %v308 = vpack.c.b16 %v300, %v299
  %317 = vmatprep.subr.bf16.mxu0 0
  %318 = vmatpush1.bf16.msra.mxu0 %v301
  %319 = vmatprep.subr.bf16.mxu0 0
  %320 = vmatpush1.bf16.msra.mxu0 %v302
  %321 = vmatprep.subr.bf16.mxu0 0
  %322 = vmatpush1.bf16.msra.mxu0 %v303
  %323 = vmatprep.subr.bf16.mxu0 0
  %324 = vmatpush1.bf16.msra.mxu0 %v304
  %325 = vmatprep.subr.bf16.mxu0 0
  %326 = vmatpush1.bf16.msra.mxu0 %v305
  %327 = vmatprep.subr.bf16.mxu0 0
  %328 = vmatpush1.bf16.msra.mxu0 %v306
  %329 = vmatprep.subr.bf16.mxu0 0
  %330 = vmatpush1.bf16.msra.mxu0 %v307
  %331 = vmatprep.subr.bf16.mxu0 0
  %332 = vmatpush1.bf16.msra.mxu0 %v308
  %333 = vmatprep.subr.bf16.mxu0 0
  %334 = vmatpush1.bf16.msra.mxu0 0
  %335 = vmatprep.subr.bf16.mxu0 0
  %336 = vmatpush1.bf16.msra.mxu0 0
  %337 = vmatprep.subr.bf16.mxu0 0
  %338 = vmatpush1.bf16.msra.mxu0 0
  %339 = vmatprep.subr.bf16.mxu0 0
  %340 = vmatpush1.bf16.msra.mxu0 0
  %341 = vmatprep.subr.bf16.mxu0 0
  %342 = vmatpush1.bf16.msra.mxu0 0
  %343 = vmatprep.subr.bf16.mxu0 0
  %344 = vmatpush1.bf16.msra.mxu0 0
  %345 = vmatprep.subr.bf16.mxu0 0
  %346 = vmatpush1.bf16.msra.mxu0 0
  %347 = vmatprep.subr.bf16.mxu0 0
  %348 = vmatpush1.bf16.msra.mxu0 0
  %349 = vmatprep.mubr.bf16.mxu0 0
  %350 = vmatmul.mubr.bf16.gmra.mrb[0].mxu0 %v238
  %v351 = vpop.f32.mrb[0].mxu0
  %v352 = vadd.f32 %v267, %v351
  %v353 = vpop.f32.mrb[0].mxu0
  %v354 = vpop.f32.mrb[0].mxu0
  %v355 = vadd.f32 %v267, %v354
  %v356 = vpop.f32.mrb[0].mxu0
  %357 = vmatprep.mubr.bf16.mxu0 0
  %358 = vmatmul.mubr.bf16.gmra.mrb[0].mxu0 %v239
  %v359 = vpop.f32.mrb[0].mxu0
  %v360 = vadd.f32 %v267, %v359
  %v361 = vpop.f32.mrb[0].mxu0
  %v362 = vpop.f32.mrb[0].mxu0
  %v363 = vadd.f32 %v267, %v362
  %v364 = vpop.f32.mrb[0].mxu0
  %365 = vmatprep.mubr.bf16.mxu0 0
  %366 = vmatmul.mubr.bf16.gmra.mrb[0].mxu0 %v240
  %v367 = vpop.f32.mrb[0].mxu0
  %v368 = vadd.f32 %v267, %v367
  %v369 = vpop.f32.mrb[0].mxu0
  %v370 = vpop.f32.mrb[0].mxu0
  %v371 = vadd.f32 %v267, %v370
  %v372 = vpop.f32.mrb[0].mxu0
  %373 = vmatprep.mubr.bf16.mxu0 0
  %374 = vmatmul.mubr.bf16.gmra.mrb[0].mxu0 %v241
  %v375 = vpop.f32.mrb[0].mxu0
  %v376 = vadd.f32 %v267, %v375
  %v377 = vpop.f32.mrb[0].mxu0
  %v378 = vpop.f32.mrb[0].mxu0
  %v379 = vadd.f32 %v267, %v378
  %v380 = vpop.f32.mrb[0].mxu0
  %381 = vmatprep.mubr.bf16.mxu0 0
  %382 = vmatmul.mubr.bf16.gmra.mrb[0].mxu0 %v242
  %v383 = vpop.f32.mrb[0].mxu0
  %v384 = vadd.f32 %v267, %v383
  %v385 = vpop.f32.mrb[0].mxu0
  %v386 = vpop.f32.mrb[0].mxu0
  %v387 = vadd.f32 %v267, %v386
  %v388 = vpop.f32.mrb[0].mxu0
  %389 = vmatprep.mubr.bf16.mxu0 0
  %390 = vmatmul.mubr.bf16.gmra.mrb[0].mxu0 %v243
  %v391 = vpop.f32.mrb[0].mxu0
  %v392 = vadd.f32 %v267, %v391
  %v393 = vpop.f32.mrb[0].mxu0
  %v394 = vpop.f32.mrb[0].mxu0
  %v395 = vadd.f32 %v267, %v394
  %v396 = vpop.f32.mrb[0].mxu0
  %397 = vmatprep.mubr.bf16.mxu0 0
  %398 = vmatmul.mubr.bf16.gmra.mrb[0].mxu0 %v244
  %v399 = vpop.f32.mrb[0].mxu0
  %v400 = vadd.f32 %v267, %v399
  %v401 = vpop.f32.mrb[0].mxu0
  %v402 = vpop.f32.mrb[0].mxu0
  %v403 = vadd.f32 %v267, %v402
  %v404 = vpop.f32.mrb[0].mxu0
  %405 = vmatprep.mubr.bf16.mxu0 0
  %406 = vmatmul.mubr.bf16.gmra.mrb[0].mxu0 %v245
  %v407 = vpop.f32.mrb[0].mxu0
  %v408 = vadd.f32 %v267, %v407
  %v409 = vpop.f32.mrb[0].mxu0
  %v410 = vpop.f32.mrb[0].mxu0
  %v411 = vadd.f32 %v267, %v410
  %v412 = vpop.f32.mrb[0].mxu0
  %413 = vdwg.mxu0
  %v414 = vmax.f32 %v352, 0.0
  %v415 = vmax.f32 %v355, 0.0
  %v416 = vmax.f32 %v360, 0.0
  %v417 = vmax.f32 %v363, 0.0
  %v418 = vmax.f32 %v368, 0.0
  %v419 = vmax.f32 %v371, 0.0
  %v420 = vmax.f32 %v376, 0.0
  %v421 = vmax.f32 %v379, 0.0
  %v422 = vmax.f32 %v384, 0.0
  %v423 = vmax.f32 %v387, 0.0
  %v424 = vmax.f32 %v392, 0.0
  %v425 = vmax.f32 %v395, 0.0
  %v426 = vmax.f32 %v400, 0.0
  %v427 = vmax.f32 %v403, 0.0
  %v428 = vmax.f32 %v408, 0.0
  %v429 = vmax.f32 %v411, 0.0
  %v430 = vld [vmem:[%s5] sm:$0x1]
  %v431 = vpack.c.bf16 %v415, %v414
  %v432 = vpack.c.bf16 %v417, %v416
  %v433 = vpack.c.bf16 %v419, %v418
  %v434 = vpack.c.bf16 %v421, %v420
  %v435 = vpack.c.bf16 %v423, %v422
  %v436 = vpack.c.bf16 %v425, %v424
  %v437 = vpack.c.bf16 %v427, %v426
  %v438 = vpack.c.bf16 %v429, %v428
  %v439 = vld [vmem:[#allocation2] sm:$0x1]
  %441 = vset.pattern.permute.xlu0 0
  %442 = vperm.xlu0 %441, %v439
  %v443 = vpop.permute.xlu0 %442
  %v445 = vlaneseq
  %v446 = vshrl.u32 %v445, 7
  %v447 = vsub.s32 0, %v446
  %v448 = vrot.slane %v443, %v447
  %449 = vmatprep.subr.bf16.mxu0 0
  %450 = vmatpush1.bf16.xpose.msra.mxu0 %v431
  %451 = vmatprep.subr.bf16.mxu0 0
  %452 = vmatpush1.bf16.xpose.msra.mxu0 %v432
  %453 = vmatprep.subr.bf16.mxu0 0
  %454 = vmatpush1.bf16.xpose.msra.mxu0 %v433
  %455 = vmatprep.subr.bf16.mxu0 0
  %456 = vmatpush1.bf16.xpose.msra.mxu0 %v434
  %457 = vmatprep.subr.bf16.mxu0 0
  %458 = vmatpush1.bf16.xpose.msra.mxu0 %v435
  %459 = vmatprep.subr.bf16.mxu0 0
  %460 = vmatpush1.bf16.xpose.msra.mxu0 %v436
  %461 = vmatprep.subr.bf16.mxu0 0
  %462 = vmatpush1.bf16.xpose.msra.mxu0 %v437
  %463 = vmatprep.subr.bf16.mxu0 0
  %464 = vmatpush1.bf16.xpose.msra.mxu0 %v438
  %465 = vmatprep.subr.bf16.mxu0 0
  %466 = vmatpush1.bf16.xpose.msra.mxu0 0
  %467 = vmatprep.subr.bf16.mxu0 0
  %468 = vmatpush1.bf16.xpose.msra.mxu0 0
  %469 = vmatprep.subr.bf16.mxu0 0
  %470 = vmatpush1.bf16.xpose.msra.mxu0 0
  %471 = vmatprep.subr.bf16.mxu0 0
  %472 = vmatpush1.bf16.xpose.msra.mxu0 0
  %473 = vmatprep.subr.bf16.mxu0 0
  %474 = vmatpush1.bf16.xpose.msra.mxu0 0
  %475 = vmatprep.subr.bf16.mxu0 0
  %476 = vmatpush1.bf16.xpose.msra.mxu0 0
  %477 = vmatprep.subr.bf16.mxu0 0
  %478 = vmatpush1.bf16.xpose.msra.mxu0 0
  %479 = vmatprep.subr.bf16.mxu0 0
  %480 = vmatpush1.bf16.xpose.msra.mxu0 0
  %481 = vmatprep.mubr.bf16.mxu0 0
  %482 = vmatmul.mubr.bf16.gmra.mrb[0].mxu0 %v430
  %v483 = vpop.f32.mrb[0].mxu0
  %v484 = vadd.f32 %v448, %v483
  %v485 = vpop.f32.mrb[0].mxu0
  %v486 = vpop.f32.mrb[0].mxu0
  %v487 = vpop.f32.mrb[0].mxu0
  %488 = vdwg.mxu0
  %489 = vst [vmem:[%s7] sm:$0x1] %v484
  // Predicated region
  $region30: #{baseline_forward.1} parent=0 // pred_check
    _
  $region31: #{baseline_forward.1} parent=0 // pred_check_branch
    %491 = sbr.rel (0) target = $region33
  $region32: #{baseline_forward.1} parent=0 // pred_region
    _
  $region33: #{baseline_forward.1} parent=0 // pred_fallthru
    _
  // Predicated region
  $region34: #{baseline_forward.1} parent=0 // pred_check
    _
  $region35: #{baseline_forward.1} parent=0 // pred_check_branch
    %493 = sbr.rel (0) target = $region37
  $region36: #{baseline_forward.1} parent=0 // pred_region
    _
  $region37: #{baseline_forward.1} parent=0 // pred_fallthru
    _

</llo_original>
